<compile_context>
chip_gen: v5e
topology: v5e:2x2
jax: 0.10.0
libtpu: 0.0.40
codegen_flags: <defaults>
</compile_context>

<pallas_src>
import math

import jax
import jax.numpy as jnp
import numpy as np
from jax.experimental import pallas as pl
from jax.experimental.pallas import tpu as pltpu

# ----------------------------- config ---------------------------------------
SEQ_LEN  = 16
PRED_LEN = 8
ENC_IN   = 4
D_MODEL  = 32
FREQ_DIM = 4          # 'h' time features
N_SV     = 50
BATCH    = 2
GAMMA    = 0.1

EMB_IN   = 3 * ENC_IN + FREQ_DIM      # [x[L-2], x[L-1], x[0], mark[L-1]] -> 16
OUT_DIM  = ENC_IN * PRED_LEN          # 32
OUT_PAD  = 128                        # lane-dense output tile


# --------------------------- Pallas kernel ----------------------------------
def svm_kernel(emb_ref, embw_ref, pe_ref,
               w1_ref, b1_ref, w2_ref, b2_ref,
               sv2gT_ref, svb_ref, alpha_ref, gamma_ref,
               wo1_ref, bo1_ref, wo2_ref, bo2_ref, out_ref):
    # last-timestep DataEmbedding (token conv rows + temporal linear fused into
    # one matmul) + positional-encoding row.  (B, 16) @ (16, 32) -> (B, 32)
    x = (jnp.dot(emb_ref[...], embw_ref[...], preferred_element_type=jnp.float32)
         + pe_ref[...])

    # feature_extractor: Linear(32,128) -> ReLU -> (Dropout eval) -> Linear(128,64)
    h = jnp.maximum(
        jnp.dot(x, w1_ref[...], preferred_element_type=jnp.float32) + b1_ref[...],
        0.0)
    feats = jnp.dot(h, w2_ref[...], preferred_element_type=jnp.float32) + b2_ref[...]

    # RBF kernel vs support vectors, matmul form with gamma pre-folded:
    #   exponent = feats @ (2*gamma*sv)^T - gamma*||f||^2 - gamma*||sv||^2
    cross = jnp.dot(feats, sv2gT_ref[...],
                    preferred_element_type=jnp.float32)              # (B, N_SV) on MXU
    fsq = gamma_ref[0] * jnp.sum(feats * feats, axis=-1, keepdims=True)  # (B, 1)
    arg = cross - fsq + svb_ref[...]                                 # (B, N_SV)
    km = jnp.exp(jnp.minimum(arg, 0.0))        # clamp: dist >= 0 despite cancellation

    # svm_out = K @ alphas  -> VPU broadcast-mul + lane reduce (alphas is (1, N_SV))
    svm = jnp.sum(km * alpha_ref[...], axis=-1, keepdims=True)       # (B, 1)

    # output_layer: Linear(1,32) is an outer product -> VPU broadcast; then
    # Linear(32, 32) zero-padded to 128 output lanes for a full-width store.
    h2 = jnp.maximum(svm * wo1_ref[...] + bo1_ref[...], 0.0)         # (B, 32)
    out_ref[...] = (jnp.dot(h2, wo2_ref[...], preferred_element_type=jnp.float32)
                    + bo2_ref[...])                                  # (B, 128)


# ------------------------- wrapper / param packing ---------------------------
def positional_encoding(max_len, d_model):
    pe = np.zeros((max_len, d_model), dtype=np.float32)
    position = np.arange(max_len, dtype=np.float32)[:, None]
    div_term = np.exp(np.arange(0, d_model, 2, dtype=np.float32)
                      * -(math.log(10000.0) / d_model))
    pe[:, 0::2] = np.sin(position * div_term)
    pe[:, 1::2] = np.cos(position * div_term)
    return jnp.asarray(pe)


def prepare_kernel_params(p):
    """Fold / repack raw params into the layouts the kernel wants (done once)."""
    embed_w = jnp.concatenate(
        [p["conv_w"][0], p["conv_w"][1], p["conv_w"][2], p["temporal_w"]],
        axis=0)                                               # (EMB_IN, D_MODEL)
    pe_row = p["pe"][SEQ_LEN - 1][None, :]                    # (1, D_MODEL)
    gamma = p["gamma"]                                        # (1,)
    sv2gT = (2.0 * gamma[0] * p["sv"]).T                      # (64, N_SV)
    sv_bias = (-gamma[0] * jnp.sum(p["sv"] ** 2, axis=-1))[None, :]   # (1, N_SV)
    wo2_pad = jnp.zeros((32, OUT_PAD), jnp.float32).at[:, :OUT_DIM].set(p["wo2"])
    bo2_pad = jnp.zeros((1, OUT_PAD), jnp.float32).at[:, :OUT_DIM].set(p["bo2"])
    return dict(embed_w=embed_w, pe_row=pe_row,
                w1=p["w1"], b1=p["b1"], w2=p["w2"], b2=p["b2"],
                sv2gT=sv2gT, sv_bias=sv_bias,
                alphas_row=p["alphas"].reshape(1, N_SV), gamma=gamma,
                wo1=p["wo1"], bo1=p["bo1"], wo2_pad=wo2_pad, bo2_pad=bo2_pad)


def svm_forward(x_enc, x_mark_enc, kp):
    """Full forward: last-timestep embedding + SVM head in one pallas_call."""
    B, L, _ = x_enc.shape
    # circular conv (k=3, pad=1, 'circular') at t = L-1 uses rows L-2, L-1, 0
    emb_in = jnp.concatenate(
        [x_enc[:, L - 2, :], x_enc[:, L - 1, :], x_enc[:, 0, :],
         x_mark_enc[:, L - 1, :]], axis=-1).astype(jnp.float32)       # (B, EMB_IN)

    b_pad = (-B) % 8                      # fill sublanes
    if b_pad:
        emb_in = jnp.pad(emb_in, ((0, b_pad), (0, 0)))
    Bp = B + b_pad

    vmem = pl.BlockSpec(memory_space=pltpu.MemorySpace.VMEM)
    smem = pl.BlockSpec(memory_space=pltpu.MemorySpace.SMEM)
    out = pl.pallas_call(
        svm_kernel,
        out_shape=jax.ShapeDtypeStruct((Bp, OUT_PAD), jnp.float32),
        in_specs=[vmem,                 # emb_in
                  vmem, vmem,           # embed_w, pe_row
                  vmem, vmem,           # w1, b1
                  vmem, vmem,           # w2, b2
                  vmem, vmem,           # sv2gT, sv_bias
                  vmem,                 # alphas_row
                  smem,                 # gamma scalar
                  vmem, vmem,           # wo1, bo1
                  vmem, vmem],          # wo2_pad, bo2_pad
        out_specs=vmem,
    )(emb_in, kp["embed_w"], kp["pe_row"], kp["w1"], kp["b1"], kp["w2"],
      kp["b2"], kp["sv2gT"], kp["sv_bias"], kp["alphas_row"], kp["gamma"],
      kp["wo1"], kp["bo1"], kp["wo2_pad"], kp["bo2_pad"])

    return out[:B, :OUT_DIM].reshape(B, PRED_LEN, ENC_IN)


def model_forward(x_enc, x_mark_enc, x_dec, x_mark_dec, kernel_params):
    # x_dec / x_mark_dec are unused by the original forward as well.
    return svm_forward(x_enc, x_mark_enc, kernel_params)


# --------------------- pure-JAX reference (original math) --------------------
def data_embedding_ref(x_enc, x_mark_enc, p):
    L = x_enc.shape[1]
    xp = jnp.pad(x_enc, ((0, 0), (1, 1), (0, 0)), mode="wrap")   # circular pad, k=3
    val = (xp[:, 0:L, :] @ p["conv_w"][0]
           + xp[:, 1:L + 1, :] @ p["conv_w"][1]
           + xp[:, 2:L + 2, :] @ p["conv_w"][2])
    return val + x_mark_enc @ p["temporal_w"] + p["pe"][None, :L, :]


def model_forward_ref(x_enc, x_mark_enc, p):
    x = data_embedding_ref(x_enc, x_mark_enc, p)[:, -1, :]
    h = jnp.maximum(x @ p["w1"] + p["b1"], 0.0)
    f = h @ p["w2"] + p["b2"]
    dist = jnp.sum((f[:, None, :] - p["sv"][None, :, :]) ** 2, axis=-1)
    km = jnp.exp(-p["gamma"][0] * dist)
    svm = km @ p["alphas"].reshape(N_SV, 1)
    h2 = jnp.maximum(svm @ p["wo1"] + p["bo1"], 0.0)
    out = h2 @ p["wo2"] + p["bo2"]
    return out.reshape(x_enc.shape[0], PRED_LEN, ENC_IN)


# --------------------------------- main --------------------------------------
if __name__ == "__main__":
    key = jax.random.PRNGKey(0)
    ks = jax.random.split(key, 20)
    f32 = jnp.float32

    params = {
        # DataEmbedding (Informer-style; dropout is identity in eval mode)
        "conv_w":     0.1 * jax.random.normal(ks[0], (3, ENC_IN, D_MODEL), f32),
        "temporal_w": 0.1 * jax.random.normal(ks[1], (FREQ_DIM, D_MODEL), f32),
        "pe":         positional_encoding(SEQ_LEN, D_MODEL),
        # feature_extractor
        "w1": 0.1 * jax.random.normal(ks[2], (D_MODEL, 128), f32),
        "b1": 0.1 * jax.random.normal(ks[3], (1, 128), f32),
        "w2": 0.1 * jax.random.normal(ks[4], (128, 64), f32),
        "b2": 0.1 * jax.random.normal(ks[5], (1, 64), f32),
        # SVM
        "sv":     jax.random.normal(ks[6], (N_SV, 64), f32),
        "alphas": jax.random.normal(ks[7], (N_SV,), f32),
        "gamma":  jnp.full((1,), GAMMA, f32),
        # output_layer
        "wo1": 0.1 * jax.random.normal(ks[8], (1, 32), f32),
        "bo1": 0.1 * jax.random.normal(ks[9], (1, 32), f32),
        "wo2": 0.1 * jax.random.normal(ks[10], (32, OUT_DIM), f32),
        "bo2": 0.1 * jax.random.normal(ks[11], (1, OUT_DIM), f32),
    }
    kernel_params = prepare_kernel_params(params)

    x_enc      = jax.random.normal(ks[12], (BATCH, SEQ_LEN, ENC_IN), f32)
    x_mark_enc = jax.random.normal(ks[13], (BATCH, SEQ_LEN, FREQ_DIM), f32)
    x_dec      = jax.random.normal(ks[14], (BATCH, PRED_LEN, ENC_IN), f32)    # unused
    x_mark_dec = jax.random.normal(ks[15], (BATCH, PRED_LEN, FREQ_DIM), f32)  # unused

    preds = model_forward(x_enc, x_mark_enc, x_dec, x_mark_dec, kernel_params)
    preds = jax.block_until_ready(preds)
    assert preds.shape == (BATCH, PRED_LEN, ENC_IN), preds.shape

    # correctness check vs. pure-JAX reference of the original (unfused) math
    ref = model_forward_ref(x_enc, x_mark_enc, params)
    assert np.allclose(np.asarray(preds), np.asarray(ref), rtol=5e-4, atol=5e-4)

    # TODO(synk): bf16 MXU operands (v6e/v7x) and a batch-parallel grid for the
    # v7x dual TensorCore only pay off once the deployment batch is >> 8.
    print("KERNEL_OK")
</pallas_src>

<mosaic_0001>
module attributes {stable_mosaic.version = 11 : i64} {
  func.func @svm_kernel(%arg0: memref<8x16xf32, #tpu.memory_space<vmem>>, %arg1: memref<16x32xf32, #tpu.memory_space<vmem>>, %arg2: memref<1x32xf32, #tpu.memory_space<vmem>>, %arg3: memref<32x128xf32, #tpu.memory_space<vmem>>, %arg4: memref<1x128xf32, #tpu.memory_space<vmem>>, %arg5: memref<128x64xf32, #tpu.memory_space<vmem>>, %arg6: memref<1x64xf32, #tpu.memory_space<vmem>>, %arg7: memref<64x50xf32, #tpu.memory_space<vmem>>, %arg8: memref<1x50xf32, #tpu.memory_space<vmem>>, %arg9: memref<1x50xf32, #tpu.memory_space<vmem>>, %arg10: memref<1xf32, #tpu.memory_space<smem>>, %arg11: memref<1x32xf32, #tpu.memory_space<vmem>>, %arg12: memref<1x32xf32, #tpu.memory_space<vmem>>, %arg13: memref<32x128xf32, #tpu.memory_space<vmem>>, %arg14: memref<1x128xf32, #tpu.memory_space<vmem>>, %arg15: memref<8x128xf32, #tpu.memory_space<vmem>>) attributes {dimension_semantics = [], scalar_prefetch = 0 : i64, scratch_operands = 0 : i64, tpu.core_type = #tpu.core_type<tc>} {
    %c0 = arith.constant 0 : index
    %c0_0 = arith.constant 0 : index
    %0 = vector.load %arg0[%c0, %c0_0] : memref<8x16xf32, #tpu.memory_space<vmem>>, vector<8x16xf32>
    %c0_1 = arith.constant 0 : index
    %c0_2 = arith.constant 0 : index
    %1 = vector.load %arg1[%c0_1, %c0_2] : memref<16x32xf32, #tpu.memory_space<vmem>>, vector<16x32xf32>
    %cst = arith.constant dense<0.000000e+00> : vector<8x32xf32>
    %2 = tpu.matmul %0, %1, %cst {dimension_numbers = #tpu.dot_dimension_numbers<[1], [0], [0], [1], [0, 0, 1, 1], [], []>} : vector<8x16xf32>, vector<16x32xf32>, vector<8x32xf32> -> vector<8x32xf32>
    %c0_3 = arith.constant 0 : index
    %c0_4 = arith.constant 0 : index
    %3 = vector.load %arg2[%c0_3, %c0_4] : memref<1x32xf32, #tpu.memory_space<vmem>>, vector<1x32xf32>
    %4 = vector.broadcast %3 : vector<1x32xf32> to vector<8x32xf32>
    %5 = arith.addf %2, %4 : vector<8x32xf32>
    %c0_5 = arith.constant 0 : index
    %c0_6 = arith.constant 0 : index
    %6 = vector.load %arg3[%c0_5, %c0_6] : memref<32x128xf32, #tpu.memory_space<vmem>>, vector<32x128xf32>
    %cst_7 = arith.constant dense<0.000000e+00> : vector<8x128xf32>
    %7 = tpu.matmul %5, %6, %cst_7 {dimension_numbers = #tpu.dot_dimension_numbers<[1], [0], [0], [1], [0, 0, 1, 1], [], []>} : vector<8x32xf32>, vector<32x128xf32>, vector<8x128xf32> -> vector<8x128xf32>
    %c0_8 = arith.constant 0 : index
    %c0_9 = arith.constant 0 : index
    %8 = vector.load %arg4[%c0_8, %c0_9] : memref<1x128xf32, #tpu.memory_space<vmem>>, vector<1x128xf32>
    %9 = vector.broadcast %8 : vector<1x128xf32> to vector<8x128xf32>
    %10 = arith.addf %7, %9 : vector<8x128xf32>
    %cst_10 = arith.constant 0.000000e+00 : f32
    %11 = vector.broadcast %cst_10 : f32 to vector<8x128xf32>
    %12 = arith.maximumf %10, %11 : vector<8x128xf32>
    %c0_11 = arith.constant 0 : index
    %c0_12 = arith.constant 0 : index
    %13 = vector.load %arg5[%c0_11, %c0_12] : memref<128x64xf32, #tpu.memory_space<vmem>>, vector<128x64xf32>
    %cst_13 = arith.constant dense<0.000000e+00> : vector<8x64xf32>
    %14 = tpu.matmul %12, %13, %cst_13 {dimension_numbers = #tpu.dot_dimension_numbers<[1], [0], [0], [1], [0, 0, 1, 1], [], []>} : vector<8x128xf32>, vector<128x64xf32>, vector<8x64xf32> -> vector<8x64xf32>
    %c0_14 = arith.constant 0 : index
    %c0_15 = arith.constant 0 : index
    %15 = vector.load %arg6[%c0_14, %c0_15] : memref<1x64xf32, #tpu.memory_space<vmem>>, vector<1x64xf32>
    %16 = vector.broadcast %15 : vector<1x64xf32> to vector<8x64xf32>
    %17 = arith.addf %14, %16 : vector<8x64xf32>
    %c0_16 = arith.constant 0 : index
    %c0_17 = arith.constant 0 : index
    %18 = vector.load %arg7[%c0_16, %c0_17] : memref<64x50xf32, #tpu.memory_space<vmem>>, vector<64x50xf32>
    %cst_18 = arith.constant dense<0.000000e+00> : vector<8x50xf32>
    %19 = tpu.matmul %17, %18, %cst_18 {dimension_numbers = #tpu.dot_dimension_numbers<[1], [0], [0], [1], [0, 0, 1, 1], [], []>} : vector<8x64xf32>, vector<64x50xf32>, vector<8x50xf32> -> vector<8x50xf32>
    %c0_19 = arith.constant 0 : index
    %20 = memref.load %arg10[%c0_19] : memref<1xf32, #tpu.memory_space<smem>>
    %21 = arith.mulf %17, %17 : vector<8x64xf32>
    %cst_20 = arith.constant dense<0.000000e+00> : vector<8xf32>
    %22 = vector.multi_reduction <add>, %21, %cst_20 [1] : vector<8x64xf32> to vector<8xf32>
    %23 = vector.shape_cast %22 : vector<8xf32> to vector<8x1xf32>
    %24 = vector.broadcast %20 : f32 to vector<8x1xf32>
    %25 = arith.mulf %24, %23 : vector<8x1xf32>
    %26 = vector.broadcast %25 : vector<8x1xf32> to vector<8x50xf32>
    %27 = arith.subf %19, %26 : vector<8x50xf32>
    %c0_21 = arith.constant 0 : index
    %c0_22 = arith.constant 0 : index
    %28 = vector.load %arg8[%c0_21, %c0_22] : memref<1x50xf32, #tpu.memory_space<vmem>>, vector<1x50xf32>
    %29 = vector.broadcast %28 : vector<1x50xf32> to vector<8x50xf32>
    %30 = arith.addf %27, %29 : vector<8x50xf32>
    %cst_23 = arith.constant 0.000000e+00 : f32
    %31 = vector.broadcast %cst_23 : f32 to vector<8x50xf32>
    %32 = arith.minimumf %30, %31 : vector<8x50xf32>
    %33 = math.exp %32 : vector<8x50xf32>
    %c0_24 = arith.constant 0 : index
    %c0_25 = arith.constant 0 : index
    %34 = vector.load %arg9[%c0_24, %c0_25] : memref<1x50xf32, #tpu.memory_space<vmem>>, vector<1x50xf32>
    %35 = vector.broadcast %34 : vector<1x50xf32> to vector<8x50xf32>
    %36 = arith.mulf %33, %35 : vector<8x50xf32>
    %cst_26 = arith.constant dense<0.000000e+00> : vector<8xf32>
    %37 = vector.multi_reduction <add>, %36, %cst_26 [1] : vector<8x50xf32> to vector<8xf32>
    %38 = vector.shape_cast %37 : vector<8xf32> to vector<8x1xf32>
    %c0_27 = arith.constant 0 : index
    %c0_28 = arith.constant 0 : index
    %39 = vector.load %arg11[%c0_27, %c0_28] : memref<1x32xf32, #tpu.memory_space<vmem>>, vector<1x32xf32>
    %40 = vector.broadcast %38 : vector<8x1xf32> to vector<8x32xf32>
    %41 = vector.broadcast %39 : vector<1x32xf32> to vector<8x32xf32>
    %42 = arith.mulf %40, %41 : vector<8x32xf32>
    %c0_29 = arith.constant 0 : index
    %c0_30 = arith.constant 0 : index
    %43 = vector.load %arg12[%c0_29, %c0_30] : memref<1x32xf32, #tpu.memory_space<vmem>>, vector<1x32xf32>
    %44 = vector.broadcast %43 : vector<1x32xf32> to vector<8x32xf32>
    %45 = arith.addf %42, %44 : vector<8x32xf32>
    %cst_31 = arith.constant 0.000000e+00 : f32
    %46 = vector.broadcast %cst_31 : f32 to vector<8x32xf32>
    %47 = arith.maximumf %45, %46 : vector<8x32xf32>
    %c0_32 = arith.constant 0 : index
    %c0_33 = arith.constant 0 : index
    %48 = vector.load %arg13[%c0_32, %c0_33] : memref<32x128xf32, #tpu.memory_space<vmem>>, vector<32x128xf32>
    %cst_34 = arith.constant dense<0.000000e+00> : vector<8x128xf32>
    %49 = tpu.matmul %47, %48, %cst_34 {dimension_numbers = #tpu.dot_dimension_numbers<[1], [0], [0], [1], [0, 0, 1, 1], [], []>} : vector<8x32xf32>, vector<32x128xf32>, vector<8x128xf32> -> vector<8x128xf32>
    %c0_35 = arith.constant 0 : index
    %c0_36 = arith.constant 0 : index
    %50 = vector.load %arg14[%c0_35, %c0_36] : memref<1x128xf32, #tpu.memory_space<vmem>>, vector<1x128xf32>
    %51 = vector.broadcast %50 : vector<1x128xf32> to vector<8x128xf32>
    %52 = arith.addf %49, %51 : vector<8x128xf32>
    %c0_37 = arith.constant 0 : index
    %c0_38 = arith.constant 0 : index
    %53 = vector.load %arg15[%c0_37, %c0_38] : memref<8x128xf32, #tpu.memory_space<vmem>>, vector<8x128xf32>
    tpu.vector_store %arg15[%c0_37, %c0_38], %52 {strides = array<i32>} : memref<8x128xf32, #tpu.memory_space<vmem>>, vector<8x128xf32>,
    return
  }
}

</mosaic_0001>

<llo_original>
// kernel: tpu_custom_call.1
$region0: #{tpu_custom_call.1}
  #allocation0 [shape = 'u32[]', space=smem, size = 0x4, offset = 0x4, fixed_abs, tag = 'smem constant byte address 0x4 - core index']
  #allocation1 [shape = 'u32[72,128]{1,0:T(1,128)}', space=vmem, size = 0x9000, scoped, tag = 'internal scratch']
  #allocation2 [shape = 'f32[1]{0:T(128)S(6)}', space=smem, size = 0x200, scoped, tag = 'scoped memory for tpu_custom_call.1']
  %s0 = inlined_call_operand.vmem [shape: f32[8,16], index: 0, kind: input, shape index: {}]
  %s1 = inlined_call_operand.vmem [shape: f32[16,32], index: 1, kind: input, shape index: {}]
  %s2 = inlined_call_operand.vmem [shape: f32[1,32], index: 2, kind: input, shape index: {}]
  %s3 = inlined_call_operand.vmem [shape: f32[32,128], index: 3, kind: input, shape index: {}]
  %s4 = inlined_call_operand.vmem [shape: f32[1,128], index: 4, kind: input, shape index: {}]
  %s5 = inlined_call_operand.vmem [shape: f32[128,64], index: 5, kind: input, shape index: {}]
  %s6 = inlined_call_operand.vmem [shape: f32[1,64], index: 6, kind: input, shape index: {}]
  %s7 = inlined_call_operand.vmem [shape: f32[64,50], index: 7, kind: input, shape index: {}]
  %s8 = inlined_call_operand.vmem [shape: f32[1,50], index: 8, kind: input, shape index: {}]
  %s9 = inlined_call_operand.vmem [shape: f32[1,50], index: 9, kind: input, shape index: {}]
  %s10 = inlined_call_operand.<no memory space> [shape: f32[1], index: 10, kind: input, shape index: {}]
  %s11 = inlined_call_operand.vmem [shape: f32[1,32], index: 11, kind: input, shape index: {}]
  %s12 = inlined_call_operand.vmem [shape: f32[1,32], index: 12, kind: input, shape index: {}]
  %s13 = inlined_call_operand.vmem [shape: f32[32,128], index: 13, kind: input, shape index: {}]
  %s14 = inlined_call_operand.vmem [shape: f32[1,128], index: 14, kind: input, shape index: {}]
  %s15 = inlined_call_operand.hbm [shape: f32[8,128], index: 15, kind: output, shape index: {}]
  %s16 = sld [smem:[#allocation0]]
  $region70: #{tpu_custom_call.1} parent=0
    _
  %s18 = ssub.s32 1, %s16
  %s19 = scalar_select 0, %s18, %s16
  %20 = sst [smem:[#allocation2]] %s10
  $region1: #{tpu_custom_call.1} parent=0
    #allocation3 [shape = 'u8[4096]{0}', space=vmem, size = 0x1000, scoped, tag = 'output window, operand 0, single buffered']
    #allocation4 [shape = 's32[1]{0}', space=sflag, size = 0x4, scoped, tag = 'scoped memory for tpu_custom_call.1']
    %21 = vsyncpa [#allocation4], 0
    // Predicated region
    $region2: #{tpu_custom_call.1} parent=1 // pred_check
      _
    $region3: #{tpu_custom_call.1} parent=1 // pred_check_branch
      %23 = sbr.rel (0) target = $region5
    $region4: #{tpu_custom_call.1} parent=1 // pred_region
      _
    $region5: #{tpu_custom_call.1} parent=1 // pred_fallthru
      _
    // Predicated region
    $region6: #{tpu_custom_call.1} parent=1 // pred_check
      _
    $region7: #{tpu_custom_call.1} parent=1 // pred_check_branch
      %25 = sbr.rel (0) target = $region9
    $region8: #{tpu_custom_call.1} parent=1 // pred_region
      _
    $region9: #{tpu_custom_call.1} parent=1 // pred_fallthru
      _
    // Predicated region
    $region10: #{tpu_custom_call.1} parent=1 // pred_check
      _
    $region11: #{tpu_custom_call.1} parent=1 // pred_check_branch
      %27 = sbr.rel (0) target = $region13
    $region12: #{tpu_custom_call.1} parent=1 // pred_region
      _
    $region13: #{tpu_custom_call.1} parent=1 // pred_fallthru
      _
    // Predicated region
    $region14: #{tpu_custom_call.1} parent=1 // pred_check
      _
    $region15: #{tpu_custom_call.1} parent=1 // pred_check_branch
      %29 = sbr.rel (0) target = $region17
    $region16: #{tpu_custom_call.1} parent=1 // pred_region
      _
    $region17: #{tpu_custom_call.1} parent=1 // pred_fallthru
      _
    // Predicated region
    $region18: #{tpu_custom_call.1} parent=1 // pred_check
      _
    $region19: #{tpu_custom_call.1} parent=1 // pred_check_branch
      %31 = sbr.rel (0) target = $region21
    $region20: #{tpu_custom_call.1} parent=1 // pred_region
      _
    $region21: #{tpu_custom_call.1} parent=1 // pred_fallthru
      _
    // Predicated region
    $region22: #{tpu_custom_call.1} parent=1 // pred_check
      _
    $region23: #{tpu_custom_call.1} parent=1 // pred_check_branch
      %33 = sbr.rel (0) target = $region25
    $region24: #{tpu_custom_call.1} parent=1 // pred_region
      _
    $region25: #{tpu_custom_call.1} parent=1 // pred_fallthru
      _
    // Predicated region
    $region26: #{tpu_custom_call.1} parent=1 // pred_check
      _
    $region27: #{tpu_custom_call.1} parent=1 // pred_check_branch
      %35 = sbr.rel (0) target = $region29
    $region28: #{tpu_custom_call.1} parent=1 // pred_region
      _
    $region29: #{tpu_custom_call.1} parent=1 // pred_fallthru
      _
    // Predicated region
    $region30: #{tpu_custom_call.1} parent=1 // pred_check
      _
    $region31: #{tpu_custom_call.1} parent=1 // pred_check_branch
      %37 = sbr.rel (0) target = $region33
    $region32: #{tpu_custom_call.1} parent=1 // pred_region
      _
    $region33: #{tpu_custom_call.1} parent=1 // pred_fallthru
      _
    // Predicated region
    $region34: #{tpu_custom_call.1} parent=1 // pred_check
      _
    $region35: #{tpu_custom_call.1} parent=1 // pred_check_branch
      %39 = sbr.rel (0) target = $region37
    $region36: #{tpu_custom_call.1} parent=1 // pred_region
      _
    $region37: #{tpu_custom_call.1} parent=1 // pred_fallthru
      _
    // Predicated region
    $region38: #{tpu_custom_call.1} parent=1 // pred_check
      _
    $region39: #{tpu_custom_call.1} parent=1 // pred_check_branch
      %41 = sbr.rel (0) target = $region41
    $region40: #{tpu_custom_call.1} parent=1 // pred_region
      _
    $region41: #{tpu_custom_call.1} parent=1 // pred_fallthru
      _
    // Predicated region
    $region42: #{tpu_custom_call.1} parent=1 // pred_check
      _
    $region43: #{tpu_custom_call.1} parent=1 // pred_check_branch
      %43 = sbr.rel (0) target = $region45
    $region44: #{tpu_custom_call.1} parent=1 // pred_region
      _
    $region45: #{tpu_custom_call.1} parent=1 // pred_fallthru
      _
    // Predicated region
    $region46: #{tpu_custom_call.1} parent=1 // pred_check
      _
    $region47: #{tpu_custom_call.1} parent=1 // pred_check_branch
      %45 = sbr.rel (0) target = $region49
    $region48: #{tpu_custom_call.1} parent=1 // pred_region
      _
    $region49: #{tpu_custom_call.1} parent=1 // pred_fallthru
      _
    // Predicated region
    $region50: #{tpu_custom_call.1} parent=1 // pred_check
      _
    $region51: #{tpu_custom_call.1} parent=1 // pred_check_branch
      %47 = sbr.rel (0) target = $region53
    $region52: #{tpu_custom_call.1} parent=1 // pred_region
      _
    $region53: #{tpu_custom_call.1} parent=1 // pred_fallthru
      _
    // Predicated region
    $region54: #{tpu_custom_call.1} parent=1 // pred_check
      _
    $region55: #{tpu_custom_call.1} parent=1 // pred_check_branch
      %49 = sbr.rel (0) target = $region57
    $region56: #{tpu_custom_call.1} parent=1 // pred_region
      _
    $region57: #{tpu_custom_call.1} parent=1 // pred_fallthru
      _
    // Predicated region
    $region58: #{tpu_custom_call.1} parent=1 // pred_check
      _
    $region59: #{tpu_custom_call.1} parent=1 // pred_check_branch
      %51 = sbr.rel (0) target = $region61
    $region60: #{tpu_custom_call.1} parent=1 // pred_region
      _
    $region61: #{tpu_custom_call.1} parent=1 // pred_fallthru
      _
    %v52 = vld [vmem:[%s0] sm:$0xff]
    %v53 = vld [vmem:[%s1] sm:$0xff]
    %v54 = vld [vmem:[%s1 + $0x8] sm:$0xff]
    %v55 = vld [vmem:[%s2] sm:$0x1]
    %v57 = vperm.slane %v55, 0
    %vm59 = vcmask 130048
    %v61 = vsel %vm59, %v52, 0
    %63 = vmatpush.msra.mxu0 0.0
    %64 = vmatpush.msra.mxu0 0.0
    %65 = vmatpush.msra.mxu0 0.0
    %66 = vmatpush.msra.mxu0 0.0
    %67 = vmatpush.msra.mxu0 0.0
    %68 = vmatpush.msra.mxu0 0.0
    %69 = vmatpush.msra.mxu0 0.0
    %70 = vmatpush.msra.mxu0 0.0
    %71 = vmatpush.msra.mxu0 0.0
    %72 = vmatpush.msra.mxu0 0.0
    %73 = vmatpush.msra.mxu0 0.0
    %74 = vmatpush.msra.mxu0 0.0
    %75 = vmatpush.msra.mxu0 0.0
    %76 = vmatpush.msra.mxu0 0.0
    %77 = vmatpush.msra.mxu0 %v54
    %78 = vmatpush.msra.mxu0 %v53
    %79 = vmatmul.f32.gmra.mxu0 %v61
    %v80 = vpop.f32.mrf.mxu0
    %v81 = vadd.f32 %v57, %v80
    %82 = vdwg.mxu0
    %v83 = vld [vmem:[%s3] sm:$0xff]
    %v84 = vld [vmem:[%s3 + $0x8] sm:$0xff]
    %v85 = vld [vmem:[%s3 + $0x10] sm:$0xff]
    %v86 = vld [vmem:[%s3 + $0x18] sm:$0xff]
    %v87 = vld [vmem:[%s4] sm:$0x1]
    %v89 = vperm.slane %v87, 0
    %vm91 = vcmask 261120
    %v93 = vsel %vm91, %v81, 0
    %95 = vmatpush.msra.mxu0 0.0
    %96 = vmatpush.msra.mxu0 0.0
    %97 = vmatpush.msra.mxu0 0.0
    %98 = vmatpush.msra.mxu0 0.0
    %99 = vmatpush.msra.mxu0 0.0
    %100 = vmatpush.msra.mxu0 0.0
    %101 = vmatpush.msra.mxu0 0.0
    %102 = vmatpush.msra.mxu0 0.0
    %103 = vmatpush.msra.mxu0 0.0
    %104 = vmatpush.msra.mxu0 0.0
    %105 = vmatpush.msra.mxu0 0.0
    %106 = vmatpush.msra.mxu0 0.0
    %107 = vmatpush.msra.mxu0 %v86
    %108 = vmatpush.msra.mxu0 %v85
    %109 = vmatpush.msra.mxu0 %v84
    %110 = vmatpush.msra.mxu0 %v83
    %111 = vmatmul.f32.gmra.mxu0 %v93
    %v112 = vpop.f32.mrf.mxu0
    %v113 = vadd.f32 %v89, %v112
    %114 = vdwg.mxu0
    %v115 = vmax.f32 %v113, 0.0
    %v116 = vld [vmem:[%s5] sm:$0xff]
    %v117 = vld [vmem:[%s5 + $0x8] sm:$0xff]
    %v118 = vld [vmem:[%s5 + $0x10] sm:$0xff]
    %v119 = vld [vmem:[%s5 + $0x18] sm:$0xff]
    %v120 = vld [vmem:[%s5 + $0x20] sm:$0xff]
    %v121 = vld [vmem:[%s5 + $0x28] sm:$0xff]
    %v122 = vld [vmem:[%s5 + $0x30] sm:$0xff]
    %v123 = vld [vmem:[%s5 + $0x38] sm:$0xff]
    %v124 = vld [vmem:[%s5 + $0x40] sm:$0xff]
    %v125 = vld [vmem:[%s5 + $0x48] sm:$0xff]
    %v126 = vld [vmem:[%s5 + $0x50] sm:$0xff]
    %v127 = vld [vmem:[%s5 + $0x58] sm:$0xff]
    %v128 = vld [vmem:[%s5 + $0x60] sm:$0xff]
    %v129 = vld [vmem:[%s5 + $0x68] sm:$0xff]
    %v130 = vld [vmem:[%s5 + $0x70] sm:$0xff]
    %v131 = vld [vmem:[%s5 + $0x78] sm:$0xff]
    %v132 = vld [vmem:[%s6] sm:$0x1]
    %v134 = vperm.slane %v132, 0
    %136 = vmatpush.msra.mxu0 %v131
    %137 = vmatpush.msra.mxu0 %v130
    %138 = vmatpush.msra.mxu0 %v129
    %139 = vmatpush.msra.mxu0 %v128
    %140 = vmatpush.msra.mxu0 %v127
    %141 = vmatpush.msra.mxu0 %v126
    %142 = vmatpush.msra.mxu0 %v125
    %143 = vmatpush.msra.mxu0 %v124
    %144 = vmatpush.msra.mxu0 %v123
    %145 = vmatpush.msra.mxu0 %v122
    %146 = vmatpush.msra.mxu0 %v121
    %147 = vmatpush.msra.mxu0 %v120
    %148 = vmatpush.msra.mxu0 %v119
    %149 = vmatpush.msra.mxu0 %v118
    %150 = vmatpush.msra.mxu0 %v117
    %151 = vmatpush.msra.mxu0 %v116
    %152 = vmatmul.f32.gmra.mxu0 %v115
    %v153 = vpop.f32.mrf.mxu0
    %v154 = vadd.f32 %v134, %v153
    %155 = vdwg.mxu0
    %v156 = vld [vmem:[%s7] sm:$0xff]
    %v157 = vld [vmem:[%s7 + $0x8] sm:$0xff]
    %v158 = vld [vmem:[%s7 + $0x10] sm:$0xff]
    %v159 = vld [vmem:[%s7 + $0x18] sm:$0xff]
    %v160 = vld [vmem:[%s7 + $0x20] sm:$0xff]
    %v161 = vld [vmem:[%s7 + $0x28] sm:$0xff]
    %v162 = vld [vmem:[%s7 + $0x30] sm:$0xff]
    %v163 = vld [vmem:[%s7 + $0x38] sm:$0xff]
    %vm164 = vcmask 523264
    %v166 = vsel %vm164, %v154, 0
    %168 = vmatpush.msra.mxu0 0.0
    %169 = vmatpush.msra.mxu0 0.0
    %170 = vmatpush.msra.mxu0 0.0
    %171 = vmatpush.msra.mxu0 0.0
    %172 = vmatpush.msra.mxu0 0.0
    %173 = vmatpush.msra.mxu0 0.0
    %174 = vmatpush.msra.mxu0 0.0
    %175 = vmatpush.msra.mxu0 0.0
    %176 = vmatpush.msra.mxu0 %v163
    %177 = vmatpush.msra.mxu0 %v162
    %178 = vmatpush.msra.mxu0 %v161
    %179 = vmatpush.msra.mxu0 %v160
    %180 = vmatpush.msra.mxu0 %v159
    %181 = vmatpush.msra.mxu0 %v158
    %182 = vmatpush.msra.mxu0 %v157
    %183 = vmatpush.msra.mxu0 %v156
    %184 = vmatmul.f32.gmra.mxu0 %v166
    %v185 = vpop.f32.mrf.mxu0
    %v186 = vadd.f32 0.0, %v185
    %187 = vdwg.mxu0
    %s188 = sld [smem:[#allocation2]]
    %v189 = vmul.f32 %v154, %v154
    %v190 = vsel %vm164, %v189, 0.0
    %191 = vadd.xlane.f32.xlu0 %v190
    %v192 = vpop.xlane.xlu0 %191
    %v193 = vstv %s188
    %v194 = vmul.f32 %v193, %v192
    %v195 = vsub.f32 %v186, %v194
    %v196 = vld [vmem:[%s8] sm:$0x1]
    %v198 = vperm.slane %v196, 0
    %v200 = vadd.f32 %v195, %v198
    %v201 = vmin.f32 %v200, 0.0
    %v202 = vmul.f32 %v201, 1.442695
    %v203 = vpow.pop %v202
    %v204 = vld [vmem:[%s9] sm:$0x1]
    %v206 = vperm.slane %v204, 0
    %v208 = vmul.f32 %v203, %v206
    %vm209 = vcmask 408576
    %v210 = vsel %vm209, %v208, 0.0
    %211 = vadd.xlane.f32.xlu0 %v210
    %v212 = vpop.xlane.xlu0 %211
    %v213 = vld [vmem:[%s11] sm:$0x1]
    %v215 = vperm.slane %v213, 0
    %v217 = vmul.f32 %v212, %v215
    %v218 = vld [vmem:[%s12] sm:$0x1]
    %v220 = vperm.slane %v218, 0
    %v222 = vadd.f32 %v217, %v220
    %v223 = vmax.f32 %v222, 0.0
    %v224 = vld [vmem:[%s13] sm:$0xff]
    %v225 = vld [vmem:[%s13 + $0x8] sm:$0xff]
    %v226 = vld [vmem:[%s13 + $0x10] sm:$0xff]
    %v227 = vld [vmem:[%s13 + $0x18] sm:$0xff]
    %v228 = vld [vmem:[%s14] sm:$0x1]
    %v230 = vperm.slane %v228, 0
    %v233 = vsel %vm91, %v223, 0
    %235 = vmatpush.msra.mxu0 0.0
    %236 = vmatpush.msra.mxu0 0.0
    %237 = vmatpush.msra.mxu0 0.0
    %238 = vmatpush.msra.mxu0 0.0
    %239 = vmatpush.msra.mxu0 0.0
    %240 = vmatpush.msra.mxu0 0.0
    %241 = vmatpush.msra.mxu0 0.0
    %242 = vmatpush.msra.mxu0 0.0
    %243 = vmatpush.msra.mxu0 0.0
    %244 = vmatpush.msra.mxu0 0.0
    %245 = vmatpush.msra.mxu0 0.0
    %246 = vmatpush.msra.mxu0 0.0
    %247 = vmatpush.msra.mxu0 %v227
    %248 = vmatpush.msra.mxu0 %v226
    %249 = vmatpush.msra.mxu0 %v225
    %250 = vmatpush.msra.mxu0 %v224
    %251 = vmatmul.f32.gmra.mxu0 %v233
    %v252 = vpop.f32.mrf.mxu0
    %v253 = vadd.f32 %v230, %v252
    %254 = vdwg.mxu0
    %255 = vst [vmem:[#allocation3] sm:$0xff] %v253
    // Predicated region
    $region62: #{tpu_custom_call.1} parent=1 // pred_check
      _
    $region63: #{tpu_custom_call.1} parent=1 // pred_check_branch
      %257 = sbr.rel (0) target = $region65
    $region64: #{tpu_custom_call.1} parent=1 // pred_region
      %259 = vsyncadd [#allocation4], 0
      %s261 = sshll.u32 [#allocation3], 4
      %s262 = int_to_ptr.vmem [resolvable:$true] %s261
      %s263 = sshll.u32 %s15, 4
      %s264 = int_to_ptr.hbm [resolvable:$true] %s263
      %266 = dma.vmem_to_hbm [thread:$0]  %s262, 128, %s264, [#allocation4]
    $region65: #{tpu_custom_call.1} parent=1 // pred_fallthru
      _
    // Predicated region
    $region66: #{tpu_custom_call.1} parent=1 // pred_check
      _
    $region67: #{tpu_custom_call.1} parent=1 // pred_check_branch
      %268 = sbr.rel (0) target = $region69
    $region68: #{tpu_custom_call.1} parent=1 // pred_region
      %270 = dma.done [#allocation4], 128
    $region69: #{tpu_custom_call.1} parent=1 // pred_fallthru
      _
    %271 = vsyncpa [#allocation4], 1

</llo_original>
